<compile_context>
chip_gen: v7x
topology: tpu7x:2x2x1
jax: 0.10.0
libtpu: 0.0.40
codegen_flags: <defaults>
</compile_context>

<pallas_src>
import jax
import jax.numpy as jnp
from jax.experimental import pallas as pl
from jax.experimental.pallas import tpu as pltpu


def _identity_alias_kernel(x_hbm_ref, o_hbm_ref):
    # Output buffer aliases the input buffer, so the result is already where
    # the output lives. Nothing to load, compute, or store.
    del x_hbm_ref, o_hbm_ref


def _identity_copy_kernel(x_hbm_ref, o_hbm_ref, copy_sem):
    # Non-aliased fallback: one whole-array HBM->HBM DMA at memory roofline,
    # zero VMEM footprint, zero grid-step overhead.
    cp = pltpu.make_async_copy(x_hbm_ref, o_hbm_ref, copy_sem)
    cp.start()
    cp.wait()


def _identity_inplace(x: jax.Array) -> jax.Array:
    """Zero-HBM-traffic identity: output aliased onto the (donated) input."""
    return pl.pallas_call(
        _identity_alias_kernel,
        out_shape=jax.ShapeDtypeStruct(x.shape, x.dtype),
        # Raw HBM refs: no tiling, no VMEM double-buffering, no grid loop.
        in_specs=[pl.BlockSpec(memory_space=pl.ANY)],
        out_specs=pl.BlockSpec(memory_space=pl.ANY),
        # Output 0 reuses input 0's buffer -> kernel moves no data.
        input_output_aliases={0: 0},
    )(x)


# Default entry point: donate the argument so the aliasing is honored in place
# (no hidden whole-array defensive copy outside the kernel).
identity = jax.jit(_identity_inplace, donate_argnums=0)


def identity_copy(x: jax.Array) -> jax.Array:
    """Identity when both input and output must stay live: single HBM->HBM DMA."""
    nbytes = x.size * x.dtype.itemsize
    return pl.pallas_call(
        _identity_copy_kernel,
        out_shape=jax.ShapeDtypeStruct(x.shape, x.dtype),
        in_specs=[pl.BlockSpec(memory_space=pl.ANY)],
        out_specs=pl.BlockSpec(memory_space=pl.ANY),
        scratch_shapes=[pltpu.SemaphoreType.DMA(())],
        # Honest advisory: one full read + one full write of the array.
        cost_estimate=pl.CostEstimate(
            flops=0, transcendentals=0, bytes_accessed=2 * nbytes),
    )(x)


if __name__ == "__main__":
    key = jax.random.PRNGKey(0)
    # Small NCHW input consistent with the surrounding model's conv conventions.
    x = jax.random.normal(key, (2, 4, 16, 16), dtype=jnp.float32)
    # Keep an independent reference buffer: `x` itself is donated below.
    x_ref = jnp.copy(x)

    # Path 1: donated, aliased, zero-traffic identity.
    y = jax.block_until_ready(identity(x))
    assert y.shape == x_ref.shape and y.dtype == x_ref.dtype
    assert bool(jnp.all(y == x_ref))

    # Path 2: non-aliased fallback (input stays live) via one HBM->HBM DMA.
    y2 = jax.block_until_ready(identity_copy(x_ref))
    assert y2.shape == x_ref.shape and y2.dtype == x_ref.dtype
    assert bool(jnp.all(y2 == x_ref))

    print("KERNEL_OK")
</pallas_src>

<mosaic_0001>
module attributes {stable_mosaic.version = 11 : i64} {
  func.func @_identity_alias_kernel(%arg0: memref<2x4x16x16xf32, #tpu.memory_space<any>>, %arg1: memref<2x4x16x16xf32, #tpu.memory_space<any>>) attributes {dimension_semantics = [], scalar_prefetch = 0 : i64, scratch_operands = 0 : i64, tpu.core_type = #tpu.core_type<tc>} {
    return
  }
}

</mosaic_0001>

<llo_original>
// kernel: _identity_inplace.1
$region0: #{_identity_inplace.1}
  #allocation0 [shape = 'u32[]', space=smem, size = 0x4, offset = 0x4, fixed_abs, tag = 'smem constant byte address 0x4 - core index']
  #allocation1 [shape = 'u32[144,128]{1,0:T(1,128)}', space=vmem, size = 0x12000, scoped, tag = 'internal scratch']
  %s0 = inlined_call_operand.hbm [shape: f32[2,4,16,16], index: 0, kind: input, shape index: {}, may-alias: {0,1}]
  %s1 = inlined_call_operand.hbm [shape: f32[2,4,16,16], index: 1, kind: output, shape index: {}, may-alias: {0,1}]
  %s2 = sld [smem:[#allocation0]]
  $region2: #{_identity_inplace.1} parent=0
    _
  %s4 = ssub.s32 1, %s2
  %s5 = scalar_select 0, %s4, %s2

</llo_original>
